<compile_context>
chip_gen: v5e
topology: v5e:2x2
jax: 0.10.0
libtpu: 0.0.40
codegen_flags: <defaults>
</compile_context>

<pallas_src>
import functools

import jax
import jax.numpy as jnp
from jax import lax
from jax.experimental import pallas as pl
from jax.experimental.pallas import tpu as pltpu


def _round_up(x, m):
    return ((x + m - 1) // m) * m


def _reduce_mlp_kernel(bid_ref, h_ref, w1_ref, b1_ref, w2_ref, b2_ref,
                       gate_ref, seg_ref, cnt_ref):
    i = pl.program_id(0)

    @pl.when(i == 0)
    def _init():
        seg_ref[...] = jnp.zeros_like(seg_ref)
        cnt_ref[...] = jnp.zeros_like(cnt_ref)

    bid = bid_ref[...]                               # (TILE_N, 1) int32
    h = h_ref[...]                                   # (TILE_N, H_pad)
    tile_n = h.shape[0]
    b_pad = seg_ref.shape[0]

    # One-hot node->graph assignment for this tile (0/1 values are exact in bf16).
    iota_b = lax.broadcasted_iota(jnp.int32, (tile_n, b_pad), 1)
    onehot = (iota_b == bid).astype(jnp.bfloat16)    # (TILE_N, B_pad)

    # seg_sum += onehot^T @ h : contract over the node axis directly (no transpose),
    # bf16 operands, f32 accumulation on the MXU.
    seg_ref[...] += lax.dot_general(
        onehot, h.astype(jnp.bfloat16),
        dimension_numbers=(((0,), (0,)), ((), ())),
        preferred_element_type=jnp.float32)

    # counts += onehot^T @ 1 : fused into an MXU dot instead of an XLU column reduction.
    ones_col = jnp.ones((tile_n, 1), jnp.bfloat16)
    cnt_ref[...] += lax.dot_general(
        onehot, ones_col,
        dimension_numbers=(((0,), (0,)), ((), ())),
        preferred_element_type=jnp.float32)

    # After the last tile: finalize the mean and run the tiny gating MLP once (f32).
    @pl.when(i == pl.num_programs(0) - 1)
    def _finalize():
        c_v = seg_ref[...] / jnp.maximum(cnt_ref[...], 1.0)           # (B_pad, H_pad)
        hidden = jnp.dot(c_v, w1_ref[...],
                         preferred_element_type=jnp.float32) + b1_ref[...]
        hidden = jnp.maximum(hidden, 0.0)
        gate = jnp.dot(hidden, w2_ref[...],
                       preferred_element_type=jnp.float32) + b2_ref[...]
        gate_ref[...] = jax.nn.sigmoid(gate)


def _apply_gate_kernel(bid_ref, h_ref, gate_ref, out_ref, *, num_batches):
    bid = bid_ref[...]                               # (TILE_N, 1) int32
    h = h_ref[...].astype(jnp.float32)               # (TILE_N, H_pad)
    gate_tbl = gate_ref[...]                         # (B_pad, H_pad) f32

    if num_batches >= 128:
        # Large B: MXU gather via one-hot matmul (bf16 operands, f32 accumulation).
        tile_n = h.shape[0]
        b_pad = gate_tbl.shape[0]
        iota_b = lax.broadcasted_iota(jnp.int32, (tile_n, b_pad), 1)
        onehot = (iota_b == bid).astype(jnp.bfloat16)
        gate_n = jnp.dot(onehot, gate_tbl.astype(jnp.bfloat16),
                         preferred_element_type=jnp.float32)
    else:
        # Small B: unrolled B-way VPU select gather; no MXU padding waste, no one-hot.
        gate_n = jnp.zeros(h.shape, jnp.float32)
        for b in range(num_batches):
            gate_n = jnp.where(bid == b, gate_tbl[b:b + 1, :], gate_n)

    out_ref[...] = (h * gate_n).astype(out_ref.dtype)


def context_forward(h_v, batch_id, w1, b1, w2, b2, *, num_batches, tile_n=128):
    """h_v: [N, H], batch_id: [N] int, weights in PyTorch Linear layout ([out, in])."""
    n, hdim = h_v.shape
    out_dtype = h_v.dtype

    h_pad = _round_up(hdim, 128)                 # lane-dense last dim
    b_pad = max(8, _round_up(num_batches, 8))    # sublane-aligned gate table
    tile_n = min(tile_n, _round_up(n, 8))
    n_pad = _round_up(n, tile_n)
    n_tiles = n_pad // tile_n

    # Pad inputs; padded nodes get batch id == num_batches (masked out of the gather
    # loop and, when b_pad == num_batches, out of the one-hot entirely; their h rows
    # are zero so they never affect real outputs).
    h_p = jnp.zeros((n_pad, h_pad), h_v.dtype).at[:n, :hdim].set(h_v)
    bid_p = jnp.full((n_pad, 1), num_batches, jnp.int32).at[:n, 0].set(
        batch_id.astype(jnp.int32))

    # Pre-transpose weights so the kernel computes x @ W + b (== x @ W.T + b in torch).
    w1_t = jnp.zeros((h_pad, h_pad), jnp.float32).at[:hdim, :hdim].set(
        jnp.asarray(w1, jnp.float32).T)
    w2_t = jnp.zeros((h_pad, h_pad), jnp.float32).at[:hdim, :hdim].set(
        jnp.asarray(w2, jnp.float32).T)
    b1_r = jnp.zeros((1, h_pad), jnp.float32).at[0, :hdim].set(
        jnp.asarray(b1, jnp.float32))
    b2_r = jnp.zeros((1, h_pad), jnp.float32).at[0, :hdim].set(
        jnp.asarray(b2, jnp.float32))

    # Pass 1: tiled segment-sum reduction + MLP finalize -> per-graph gate table.
    gate_tbl = pl.pallas_call(
        _reduce_mlp_kernel,
        out_shape=jax.ShapeDtypeStruct((b_pad, h_pad), jnp.float32),
        grid=(n_tiles,),
        in_specs=[
            pl.BlockSpec((tile_n, 1), lambda i: (i, 0)),
            pl.BlockSpec((tile_n, h_pad), lambda i: (i, 0)),
            pl.BlockSpec((h_pad, h_pad), lambda i: (0, 0)),
            pl.BlockSpec((1, h_pad), lambda i: (0, 0)),
            pl.BlockSpec((h_pad, h_pad), lambda i: (0, 0)),
            pl.BlockSpec((1, h_pad), lambda i: (0, 0)),
        ],
        out_specs=pl.BlockSpec((b_pad, h_pad), lambda i: (0, 0)),
        scratch_shapes=[
            pltpu.VMEM((b_pad, h_pad), jnp.float32),   # seg_sum accumulator
            pltpu.VMEM((b_pad, 1), jnp.float32),       # counts accumulator
        ],
        compiler_params=pltpu.CompilerParams(
            dimension_semantics=("arbitrary",),        # reduction axis
            vmem_limit_bytes=32 * 1024 * 1024),        # fits v7x's smaller VMEM
    )(bid_p, h_p, w1_t, b1_r, w2_t, b2_r)

    # Pass 2: stream h_V tiles and apply the gate; "parallel" -> shards across TCs (v7x).
    apply_kernel = functools.partial(_apply_gate_kernel, num_batches=num_batches)
    out_p = pl.pallas_call(
        apply_kernel,
        out_shape=jax.ShapeDtypeStruct((n_pad, h_pad), out_dtype),
        grid=(n_tiles,),
        in_specs=[
            pl.BlockSpec((tile_n, 1), lambda i: (i, 0)),
            pl.BlockSpec((tile_n, h_pad), lambda i: (i, 0)),
            pl.BlockSpec((b_pad, h_pad), lambda i: (0, 0)),
        ],
        out_specs=pl.BlockSpec((tile_n, h_pad), lambda i: (i, 0)),
        compiler_params=pltpu.CompilerParams(
            dimension_semantics=("parallel",),
            vmem_limit_bytes=32 * 1024 * 1024),
    )(bid_p, h_p, gate_tbl)

    return out_p[:n, :hdim]


def _reference(h_v, batch_id, w1, b1, w2, b2, num_batches):
    # Pure-JAX f32 reference for sanity checking.
    seg_sum = jax.ops.segment_sum(h_v, batch_id, num_segments=num_batches)
    counts = jax.ops.segment_sum(jnp.ones((h_v.shape[0],)), batch_id,
                                 num_segments=num_batches)
    c_v = seg_sum / jnp.maximum(counts, 1.0)[:, None]
    x = c_v[batch_id]
    x = jnp.maximum(x @ w1.T + b1, 0.0)
    gate = jax.nn.sigmoid(x @ w2.T + b2)
    return h_v * gate


if __name__ == "__main__":
    key = jax.random.PRNGKey(0)
    k_h, k_w1, k_b1, k_w2, k_b2, k_bid = jax.random.split(key, 6)

    N, H, B = 300, 32, 4  # nodes, num_hidden, graphs in the batch (exercises padding)

    h_v = jax.random.normal(k_h, (N, H), dtype=jnp.float32)
    batch_id = jnp.sort(jax.random.randint(k_bid, (N,), 0, B, dtype=jnp.int32))

    # PyTorch Linear layout: [out_features, in_features].
    bound = 1.0 / (H ** 0.5)
    w1 = jax.random.uniform(k_w1, (H, H), jnp.float32, -bound, bound)
    b1 = jax.random.uniform(k_b1, (H,), jnp.float32, -bound, bound)
    w2 = jax.random.uniform(k_w2, (H, H), jnp.float32, -bound, bound)
    b2 = jax.random.uniform(k_b2, (H,), jnp.float32, -bound, bound)

    out = context_forward(h_v, batch_id, w1, b1, w2, b2, num_batches=B)
    out = jax.block_until_ready(out)

    ref = _reference(h_v, batch_id, w1, b1, w2, b2, B)
    # bf16 MXU operands (f32 accumulation) in the reduction -> slightly looser tolerance.
    assert out.shape == ref.shape, "shape mismatch vs reference"
    assert jnp.allclose(out, ref, atol=2e-2, rtol=2e-2), "mismatch vs reference"

    print("KERNEL_OK")
</pallas_src>

<mosaic_0001>
module attributes {stable_mosaic.version = 11 : i64} {
  func.func @_reduce_mlp_kernel(%arg0: i32, %arg1: memref<128x1xi32, #tpu.memory_space<vmem>>, %arg2: memref<128x128xf32, #tpu.memory_space<vmem>>, %arg3: memref<128x128xf32, #tpu.memory_space<vmem>>, %arg4: memref<1x128xf32, #tpu.memory_space<vmem>>, %arg5: memref<128x128xf32, #tpu.memory_space<vmem>>, %arg6: memref<1x128xf32, #tpu.memory_space<vmem>>, %arg7: memref<8x128xf32, #tpu.memory_space<vmem>>, %arg8: memref<8x128xf32, #tpu.memory_space<vmem>>, %arg9: memref<8x1xf32, #tpu.memory_space<vmem>>) attributes {dimension_semantics = [#tpu.dimension_semantics<arbitrary>], iteration_bounds = array<i64: 3>, scalar_prefetch = 0 : i64, scratch_operands = 2 : i64, tpu.core_type = #tpu.core_type<tc>, window_params = [{transform_indices = @transform_0, window_bounds = array<i64: 128, 1>}, {transform_indices = @transform_1, window_bounds = array<i64: 128, 128>}, {pipeline_mode = #tpu.pipeline_mode<synchronous>, transform_indices = @transform_2, window_bounds = array<i64: 128, 128>}, {pipeline_mode = #tpu.pipeline_mode<synchronous>, transform_indices = @transform_3, window_bounds = array<i64: 1, 128>}, {pipeline_mode = #tpu.pipeline_mode<synchronous>, transform_indices = @transform_4, window_bounds = array<i64: 128, 128>}, {pipeline_mode = #tpu.pipeline_mode<synchronous>, transform_indices = @transform_5, window_bounds = array<i64: 1, 128>}, {pipeline_mode = #tpu.pipeline_mode<synchronous>, transform_indices = @transform_6, window_bounds = array<i64: 8, 128>}]} {
    %c0_i32 = arith.constant 0 : i32
    %0 = arith.cmpi eq, %arg0, %c0_i32 : i32
    %1 = arith.extui %0 : i1 to i32
    %c0_i32_0 = arith.constant 0 : i32
    %2 = arith.cmpi ne, %1, %c0_i32_0 : i32
    scf.if %2 {
      %cst_15 = arith.constant 0.000000e+00 : f32
      %24 = vector.broadcast %cst_15 : f32 to vector<8x128xf32>
      %c0_16 = arith.constant 0 : index
      %c0_17 = arith.constant 0 : index
      %25 = vector.load %arg8[%c0_16, %c0_17] : memref<8x128xf32, #tpu.memory_space<vmem>>, vector<8x128xf32>
      tpu.vector_store %arg8[%c0_16, %c0_17], %24 {strides = array<i32>} : memref<8x128xf32, #tpu.memory_space<vmem>>, vector<8x128xf32>,
      %cst_18 = arith.constant 0.000000e+00 : f32
      %26 = vector.broadcast %cst_18 : f32 to vector<8x1xf32>
      %c0_19 = arith.constant 0 : index
      %c0_20 = arith.constant 0 : index
      %27 = vector.load %arg9[%c0_19, %c0_20] : memref<8x1xf32, #tpu.memory_space<vmem>>, vector<8x1xf32>
      tpu.vector_store %arg9[%c0_19, %c0_20], %26 {strides = array<i32>} : memref<8x1xf32, #tpu.memory_space<vmem>>, vector<8x1xf32>,
    } else {
    }
    %c0 = arith.constant 0 : index
    %c0_1 = arith.constant 0 : index
    %3 = vector.load %arg1[%c0, %c0_1] : memref<128x1xi32, #tpu.memory_space<vmem>>, vector<128x1xi32>
    %c0_2 = arith.constant 0 : index
    %c0_3 = arith.constant 0 : index
    %4 = vector.load %arg2[%c0_2, %c0_3] : memref<128x128xf32, #tpu.memory_space<vmem>>, vector<128x128xf32>
    %5 = tpu.iota {dimensions = array<i32: 1>} : vector<128x8xi32>
    %6 = vector.broadcast %3 : vector<128x1xi32> to vector<128x8xi32>
    %7 = arith.cmpi eq, %5, %6 : vector<128x8xi32>
    %8 = arith.extui %7 : vector<128x8xi1> to vector<128x8xi32>
    %9 = arith.sitofp %8 : vector<128x8xi32> to vector<128x8xf32>
    %10 = arith.truncf %9 : vector<128x8xf32> to vector<128x8xbf16>
    %c0_4 = arith.constant 0 : index
    %c0_5 = arith.constant 0 : index
    %11 = vector.load %arg8[%c0_4, %c0_5] : memref<8x128xf32, #tpu.memory_space<vmem>>, vector<8x128xf32>
    %12 = arith.truncf %4 : vector<128x128xf32> to vector<128x128xbf16>
    %cst = arith.constant dense<0.000000e+00> : vector<8x128xf32>
    %13 = tpu.matmul %10, %12, %cst {dimension_numbers = #tpu.dot_dimension_numbers<[0], [0], [1], [1], [0, 1, 1, 1], [], []>} : vector<128x8xbf16>, vector<128x128xbf16>, vector<8x128xf32> -> vector<8x128xf32>
    %14 = arith.addf %11, %13 : vector<8x128xf32>
    %c0_6 = arith.constant 0 : index
    %c0_7 = arith.constant 0 : index
    %15 = vector.load %arg8[%c0_6, %c0_7] : memref<8x128xf32, #tpu.memory_space<vmem>>, vector<8x128xf32>
    tpu.vector_store %arg8[%c0_6, %c0_7], %14 {strides = array<i32>} : memref<8x128xf32, #tpu.memory_space<vmem>>, vector<8x128xf32>,
    %cst_8 = arith.constant 1.000000e+00 : bf16
    %16 = vector.broadcast %cst_8 : bf16 to vector<128x1xbf16>
    %c0_9 = arith.constant 0 : index
    %c0_10 = arith.constant 0 : index
    %17 = vector.load %arg9[%c0_9, %c0_10] : memref<8x1xf32, #tpu.memory_space<vmem>>, vector<8x1xf32>
    %cst_11 = arith.constant dense<0.000000e+00> : vector<8x1xf32>
    %18 = tpu.matmul %10, %16, %cst_11 {dimension_numbers = #tpu.dot_dimension_numbers<[0], [0], [1], [1], [0, 1, 1, 1], [], []>} : vector<128x8xbf16>, vector<128x1xbf16>, vector<8x1xf32> -> vector<8x1xf32>
    %19 = arith.addf %17, %18 : vector<8x1xf32>
    %c0_12 = arith.constant 0 : index
    %c0_13 = arith.constant 0 : index
    %20 = vector.load %arg9[%c0_12, %c0_13] : memref<8x1xf32, #tpu.memory_space<vmem>>, vector<8x1xf32>
    tpu.vector_store %arg9[%c0_12, %c0_13], %19 {strides = array<i32>} : memref<8x1xf32, #tpu.memory_space<vmem>>, vector<8x1xf32>,
    %c2_i32 = arith.constant 2 : i32
    %21 = arith.cmpi eq, %arg0, %c2_i32 : i32
    %22 = arith.extui %21 : i1 to i32
    %c0_i32_14 = arith.constant 0 : i32
    %23 = arith.cmpi ne, %22, %c0_i32_14 : i32
    scf.if %23 {
      %c0_15 = arith.constant 0 : index
      %c0_16 = arith.constant 0 : index
      %24 = vector.load %arg8[%c0_15, %c0_16] : memref<8x128xf32, #tpu.memory_space<vmem>>, vector<8x128xf32>
      %c0_17 = arith.constant 0 : index
      %c0_18 = arith.constant 0 : index
      %25 = vector.load %arg9[%c0_17, %c0_18] : memref<8x1xf32, #tpu.memory_space<vmem>>, vector<8x1xf32>
      %cst_19 = arith.constant 1.000000e+00 : f32
      %26 = vector.broadcast %cst_19 : f32 to vector<8x1xf32>
      %27 = arith.maximumf %25, %26 : vector<8x1xf32>
      %28 = vector.broadcast %27 : vector<8x1xf32> to vector<8x128xf32>
      %29 = arith.divf %24, %28 : vector<8x128xf32>
      %c0_20 = arith.constant 0 : index
      %c0_21 = arith.constant 0 : index
      %30 = vector.load %arg3[%c0_20, %c0_21] : memref<128x128xf32, #tpu.memory_space<vmem>>, vector<128x128xf32>
      %cst_22 = arith.constant dense<0.000000e+00> : vector<8x128xf32>
      %31 = tpu.matmul %29, %30, %cst_22 {dimension_numbers = #tpu.dot_dimension_numbers<[1], [0], [0], [1], [0, 0, 1, 1], [], []>} : vector<8x128xf32>, vector<128x128xf32>, vector<8x128xf32> -> vector<8x128xf32>
      %c0_23 = arith.constant 0 : index
      %c0_24 = arith.constant 0 : index
      %32 = vector.load %arg4[%c0_23, %c0_24] : memref<1x128xf32, #tpu.memory_space<vmem>>, vector<1x128xf32>
      %33 = vector.broadcast %32 : vector<1x128xf32> to vector<8x128xf32>
      %34 = arith.addf %31, %33 : vector<8x128xf32>
      %cst_25 = arith.constant 0.000000e+00 : f32
      %35 = vector.broadcast %cst_25 : f32 to vector<8x128xf32>
      %36 = arith.maximumf %34, %35 : vector<8x128xf32>
      %c0_26 = arith.constant 0 : index
      %c0_27 = arith.constant 0 : index
      %37 = vector.load %arg5[%c0_26, %c0_27] : memref<128x128xf32, #tpu.memory_space<vmem>>, vector<128x128xf32>
      %cst_28 = arith.constant dense<0.000000e+00> : vector<8x128xf32>
      %38 = tpu.matmul %36, %37, %cst_28 {dimension_numbers = #tpu.dot_dimension_numbers<[1], [0], [0], [1], [0, 0, 1, 1], [], []>} : vector<8x128xf32>, vector<128x128xf32>, vector<8x128xf32> -> vector<8x128xf32>
      %c0_29 = arith.constant 0 : index
      %c0_30 = arith.constant 0 : index
      %39 = vector.load %arg6[%c0_29, %c0_30] : memref<1x128xf32, #tpu.memory_space<vmem>>, vector<1x128xf32>
      %40 = vector.broadcast %39 : vector<1x128xf32> to vector<8x128xf32>
      %41 = arith.addf %38, %40 : vector<8x128xf32>
      %42 = arith.negf %41 : vector<8x128xf32>
      %43 = math.exp %42 : vector<8x128xf32>
      %cst_31 = arith.constant 1.000000e+00 : f32
      %44 = vector.broadcast %cst_31 : f32 to vector<8x128xf32>
      %45 = arith.addf %44, %43 : vector<8x128xf32>
      %46 = arith.divf %44, %45 : vector<8x128xf32>
      %c0_32 = arith.constant 0 : index
      %c0_33 = arith.constant 0 : index
      %47 = vector.load %arg7[%c0_32, %c0_33] : memref<8x128xf32, #tpu.memory_space<vmem>>, vector<8x128xf32>
      tpu.vector_store %arg7[%c0_32, %c0_33], %46 {strides = array<i32>} : memref<8x128xf32, #tpu.memory_space<vmem>>, vector<8x128xf32>,
    } else {
    }
    return
  }
  func.func @transform_0(%arg0: i32) -> (i32, i32) {
    %c0_i32 = arith.constant 0 : i32
    %c0_i32_0 = arith.constant 0 : i32
    return %arg0, %c0_i32 : i32, i32
  }
  func.func @transform_1(%arg0: i32) -> (i32, i32) {
    %c0_i32 = arith.constant 0 : i32
    %c0_i32_0 = arith.constant 0 : i32
    return %arg0, %c0_i32 : i32, i32
  }
  func.func @transform_2(%arg0: i32) -> (i32, i32) {
    %c0_i32 = arith.constant 0 : i32
    %c0_i32_0 = arith.constant 0 : i32
    %c0_i32_1 = arith.constant 0 : i32
    return %c0_i32, %c0_i32_0 : i32, i32
  }
  func.func @transform_3(%arg0: i32) -> (i32, i32) {
    %c0_i32 = arith.constant 0 : i32
    %c0_i32_0 = arith.constant 0 : i32
    %c0_i32_1 = arith.constant 0 : i32
    return %c0_i32, %c0_i32_0 : i32, i32
  }
  func.func @transform_4(%arg0: i32) -> (i32, i32) {
    %c0_i32 = arith.constant 0 : i32
    %c0_i32_0 = arith.constant 0 : i32
    %c0_i32_1 = arith.constant 0 : i32
    return %c0_i32, %c0_i32_0 : i32, i32
  }
  func.func @transform_5(%arg0: i32) -> (i32, i32) {
    %c0_i32 = arith.constant 0 : i32
    %c0_i32_0 = arith.constant 0 : i32
    %c0_i32_1 = arith.constant 0 : i32
    return %c0_i32, %c0_i32_0 : i32, i32
  }
  func.func @transform_6(%arg0: i32) -> (i32, i32) {
    %c0_i32 = arith.constant 0 : i32
    %c0_i32_0 = arith.constant 0 : i32
    %c0_i32_1 = arith.constant 0 : i32
    return %c0_i32, %c0_i32_0 : i32, i32
  }
}

</mosaic_0001>

<llo_original>
// kernel: tpu_custom_call.1
$region0: #{tpu_custom_call.1}
  #allocation0 [shape = 'u32[]', space=smem, size = 0x4, offset = 0x4, fixed_abs, tag = 'smem constant byte address 0x4 - core index']
  #allocation1 [shape = 'u32[72,128]{1,0:T(1,128)}', space=vmem, size = 0x9000, scoped, tag = 'internal scratch']
  #allocation2 [shape = 'f32[8,128]{1,0:T(8,128)}', space=vmem, size = 0x1000, scoped, tag = 'scratch operand']
  #allocation3 [shape = 'f32[8,1]{1,0:T(8,128)}', space=vmem, size = 0x1000, scoped, tag = 'scratch operand']
  %s0 = inlined_call_operand.vmem [shape: s32[384,1], index: 0, kind: input, shape index: {}]
  %s1 = inlined_call_operand.vmem [shape: f32[384,128], index: 1, kind: input, shape index: {}]
  %s2 = inlined_call_operand.hbm [shape: f32[128,128], index: 2, kind: input, shape index: {}]
  %s3 = inlined_call_operand.vmem [shape: f32[1,128], index: 3, kind: input, shape index: {}]
  %s4 = inlined_call_operand.hbm [shape: f32[128,128], index: 4, kind: input, shape index: {}]
  %s5 = inlined_call_operand.vmem [shape: f32[1,128], index: 5, kind: input, shape index: {}]
  %s6 = inlined_call_operand.hbm [shape: f32[8,128], index: 6, kind: output, shape index: {}]
  %s7 = sld [smem:[#allocation0]]
  $region73: #{tpu_custom_call.1} parent=0
    _
  %s9 = ssub.s32 1, %s7
  %s10 = scalar_select 0, %s9, %s7
  $region1: #{tpu_custom_call.1} parent=0
    #allocation4 [shape = 'u8[65536]{0}', space=vmem, size = 0x10000, scoped, tag = 'input window, operand 2, single buffered']
    #allocation5 [shape = 's32[2]{0}', space=sflag, size = 0x8, scoped, tag = 'scoped memory for tpu_custom_call.1']
    #allocation6 [shape = 's32[2]{0}', space=sflag, size = 0x8, scoped, tag = 'scoped memory for tpu_custom_call.1']
    #allocation7 [shape = 'u8[65536]{0}', space=vmem, size = 0x10000, scoped, tag = 'input window, operand 4, single buffered']
    #allocation8 [shape = 's32[1]{0}', space=sflag, size = 0x4, scoped, tag = 'scoped memory for tpu_custom_call.1']
    #allocation9 [shape = 'u8[4096]{0}', space=vmem, size = 0x1000, scoped, tag = 'output window, operand 0, single buffered']
    %11 = vsyncpa [#allocation5], 0
    %12 = vsyncpa [#allocation8], 0
    %13 = vsyncpa [#allocation6], 0
    loop: start=0, step=1, limit=5
    $region2: #{tpu_custom_call.1} parent=1 // loop_pre_header
      _
    $region3: #{tpu_custom_call.1} parent=1 // loop_header
      %s15 = sphi 0, %s19
      %p16 = scmp.ge.s32.totalorder %s15, 5
      %s25 = sphi 0, %s27
      %s28 = sphi 0, %s25
      %s29 = sphi 0, %s28
      %s45 = sphi 0, %s29
      %s51 = sphi 0, %s53
      %s54 = sphi 0, %s51
      %s55 = sphi 0, %s54
      %s71 = sphi 0, %s55
      %s75 = sphi 0, %s75
      %s77 = sphi 0, %s75
      %s78 = sphi 0, %s77
      %s92 = sphi 0, %s78
      %s96 = sphi 0, %s96
      %s98 = sphi 0, %s96
      %s99 = sphi 0, %s98
      %s113 = sphi 0, %s99
      %s117 = sphi 0, %s117
      %s119 = sphi 0, %s117
      %s120 = sphi 0, %s119
      %s134 = sphi 0, %s120
      %s138 = sphi 0, %s138
      %s140 = sphi 0, %s138
      %s141 = sphi 0, %s140
      %s155 = sphi 0, %s141
      %s159 = sphi 0, %s159
      %s161 = sphi 0, %s159
      %s162 = sphi 0, %s161
      %s176 = sphi 0, %s162
    $region4: #{tpu_custom_call.1} parent=1 // loop_header_branch
      %18 = sbr.rel (%p16) target = $region8
    $region5: #{tpu_custom_call.1} parent=1 // loop_body
      %s20 = ssub.s32 %s15, 1
      %s21 = ssub.s32 %s15, 2
      %s22 = sadd.s32 %s15, 1
      %s23 = ssub.s32 %s15, %s22
      %p24 = scmp.eq.s32.totalorder %s23, 0
      %s26 = sadd.s32 %s25, 1
      %s27 = scalar_select %p24, %s25, %s26
      %p30 = pneg %p24
      %p31 = scmp.eq.s32.totalorder %s15, 2
      %p32 = por %p30, %p31
      %p33 = scmp.ne.s32.totalorder %s25, %s28
      %p34 = scmp.eq.s32.totalorder %s15, 0
      %p35 = por %p33, %p34
      %p36 = scmp.ne.s32.totalorder %s25, %s28
      %p37 = scmp.eq.s32.totalorder %s20, 2
      %p38 = por %p36, %p37
      %p39 = scmp.ne.s32.totalorder %s28, %s29
      %p40 = scmp.eq.s32.totalorder %s20, 0
      %p41 = por %p39, %p40
      %p42 = scmp.ne.s32.totalorder %s28, %s29
      %p43 = scmp.eq.s32.totalorder %s21, 2
      %p44 = por %p42, %p43
      %p46 = scmp.ne.s32.totalorder %s29, %s45
      %p47 = scmp.eq.s32.totalorder %s21, 0
      %p48 = por %p46, %p47
      %s49 = ssub.s32 %s15, %s22
      %p50 = scmp.eq.s32.totalorder %s49, 0
      %s52 = sadd.s32 %s51, 1
      %s53 = scalar_select %p50, %s51, %s52
      %p56 = pneg %p50
      %p57 = scmp.eq.s32.totalorder %s15, 2
      %p58 = por %p56, %p57
      %p59 = scmp.ne.s32.totalorder %s51, %s54
      %p60 = scmp.eq.s32.totalorder %s15, 0
      %p61 = por %p59, %p60
      %p62 = scmp.ne.s32.totalorder %s51, %s54
      %p63 = scmp.eq.s32.totalorder %s20, 2
      %p64 = por %p62, %p63
      %p65 = scmp.ne.s32.totalorder %s54, %s55
      %p66 = scmp.eq.s32.totalorder %s20, 0
      %p67 = por %p65, %p66
      %p68 = scmp.ne.s32.totalorder %s54, %s55
      %p69 = scmp.eq.s32.totalorder %s21, 2
      %p70 = por %p68, %p69
      %p72 = scmp.ne.s32.totalorder %s55, %s71
      %p73 = scmp.eq.s32.totalorder %s21, 0
      %p74 = por %p72, %p73
      %s76 = sadd.s32 %s75, 1
      %p79 = scmp.eq.s32.totalorder %s15, 2
      %p80 = scmp.ne.s32.totalorder %s75, %s77
      %p81 = scmp.eq.s32.totalorder %s15, 0
      %p82 = por %p80, %p81
      %p83 = scmp.ne.s32.totalorder %s75, %s77
      %p84 = scmp.eq.s32.totalorder %s20, 2
      %p85 = por %p83, %p84
      %p86 = scmp.ne.s32.totalorder %s77, %s78
      %p87 = scmp.eq.s32.totalorder %s20, 0
      %p88 = por %p86, %p87
      %p89 = scmp.ne.s32.totalorder %s77, %s78
      %p90 = scmp.eq.s32.totalorder %s21, 2
      %p91 = por %p89, %p90
      %p93 = scmp.ne.s32.totalorder %s78, %s92
      %p94 = scmp.eq.s32.totalorder %s21, 0
      %p95 = por %p93, %p94
      %s97 = sadd.s32 %s96, 1
      %p100 = scmp.eq.s32.totalorder %s15, 2
      %p101 = scmp.ne.s32.totalorder %s96, %s98
      %p102 = scmp.eq.s32.totalorder %s15, 0
      %p103 = por %p101, %p102
      %p104 = scmp.ne.s32.totalorder %s96, %s98
      %p105 = scmp.eq.s32.totalorder %s20, 2
      %p106 = por %p104, %p105
      %p107 = scmp.ne.s32.totalorder %s98, %s99
      %p108 = scmp.eq.s32.totalorder %s20, 0
      %p109 = por %p107, %p108
      %p110 = scmp.ne.s32.totalorder %s98, %s99
      %p111 = scmp.eq.s32.totalorder %s21, 2
      %p112 = por %p110, %p111
      %p114 = scmp.ne.s32.totalorder %s99, %s113
      %p115 = scmp.eq.s32.totalorder %s21, 0
      %p116 = por %p114, %p115
      %s118 = sadd.s32 %s117, 1
      %p121 = scmp.eq.s32.totalorder %s15, 2
      %p122 = scmp.ne.s32.totalorder %s117, %s119
      %p123 = scmp.eq.s32.totalorder %s15, 0
      %p124 = por %p122, %p123
      %p125 = scmp.ne.s32.totalorder %s117, %s119
      %p126 = scmp.eq.s32.totalorder %s20, 2
      %p127 = por %p125, %p126
      %p128 = scmp.ne.s32.totalorder %s119, %s120
      %p129 = scmp.eq.s32.totalorder %s20, 0
      %p130 = por %p128, %p129
      %p131 = scmp.ne.s32.totalorder %s119, %s120
      %p132 = scmp.eq.s32.totalorder %s21, 2
      %p133 = por %p131, %p132
      %p135 = scmp.ne.s32.totalorder %s120, %s134
      %p136 = scmp.eq.s32.totalorder %s21, 0
      %p137 = por %p135, %p136
      %s139 = sadd.s32 %s138, 1
      %p142 = scmp.eq.s32.totalorder %s15, 2
      %p143 = scmp.ne.s32.totalorder %s138, %s140
      %p144 = scmp.eq.s32.totalorder %s15, 0
      %p145 = por %p143, %p144
      %p146 = scmp.ne.s32.totalorder %s138, %s140
      %p147 = scmp.eq.s32.totalorder %s20, 2
      %p148 = por %p146, %p147
      %p149 = scmp.ne.s32.totalorder %s140, %s141
      %p150 = scmp.eq.s32.totalorder %s20, 0
      %p151 = por %p149, %p150
      %p152 = scmp.ne.s32.totalorder %s140, %s141
      %p153 = scmp.eq.s32.totalorder %s21, 2
      %p154 = por %p152, %p153
      %p156 = scmp.ne.s32.totalorder %s141, %s155
      %p157 = scmp.eq.s32.totalorder %s21, 0
      %p158 = por %p156, %p157
      %s160 = sadd.s32 %s159, 1
      %p163 = scmp.eq.s32.totalorder %s15, 2
      %p164 = scmp.ne.s32.totalorder %s159, %s161
      %p165 = scmp.eq.s32.totalorder %s15, 0
      %p166 = por %p164, %p165
      %p167 = scmp.ne.s32.totalorder %s159, %s161
      %p168 = scmp.eq.s32.totalorder %s20, 2
      %p169 = por %p167, %p168
      %p170 = scmp.ne.s32.totalorder %s161, %s162
      %p171 = scmp.eq.s32.totalorder %s20, 0
      %p172 = por %p170, %p171
      %p173 = scmp.ne.s32.totalorder %s161, %s162
      %p174 = scmp.eq.s32.totalorder %s21, 2
      %p175 = por %p173, %p174
      %p177 = scmp.ne.s32.totalorder %s162, %s176
      %p178 = scmp.eq.s32.totalorder %s21, 0
      %p179 = por %p177, %p178
      %p180 = scmp.le.s32.totalorder 1, %s15
      %p181 = scmp.lt.s32.totalorder %s15, 4
      %p182 = pnand %p180, %p181
      %p183 = pneg %p182
      // Predicated region
      $region9: #{tpu_custom_call.1} parent=5 // pred_check
        _
      $region10: #{tpu_custom_call.1} parent=5 // pred_check_branch
        %185 = sbr.rel (%p182) target = $region12
      $region11: #{tpu_custom_call.1} parent=5 // pred_region
        %s186 = ssub.s32 %s15, 1
        // Predicated region
        $region13: #{tpu_custom_call.1} parent=11 // pred_check
          %p187 = pneg %p88
        $region14: #{tpu_custom_call.1} parent=11 // pred_check_branch
          %189 = sbr.rel (%p187) target = $region16
        $region15: #{tpu_custom_call.1} parent=11 // pred_region
          %191 = vsyncadd [#allocation5], 0
          %s192 = sshll.u32 %s2, 4
          %s193 = int_to_ptr.hbm [resolvable:$true] %s192
          %s194 = sshll.u32 [#allocation4], 4
          %s195 = int_to_ptr.vmem [resolvable:$true] %s194
          %200 = dma.hbm_to_vmem [thread:$0]  %s193, 2048, %s195, [#allocation5], 128, 128, 8
        $region16: #{tpu_custom_call.1} parent=11 // pred_fallthru
          _
        // Predicated region
        $region17: #{tpu_custom_call.1} parent=11 // pred_check
          %p201 = pneg %p109
        $region18: #{tpu_custom_call.1} parent=11 // pred_check_branch
          %203 = sbr.rel (%p201) target = $region20
        $region19: #{tpu_custom_call.1} parent=11 // pred_region
          _
        $region20: #{tpu_custom_call.1} parent=11 // pred_fallthru
          _
        // Predicated region
        $region21: #{tpu_custom_call.1} parent=11 // pred_check
          %p204 = pneg %p130
        $region22: #{tpu_custom_call.1} parent=11 // pred_check_branch
          %206 = sbr.rel (%p204) target = $region24
        $region23: #{tpu_custom_call.1} parent=11 // pred_region
          %208 = vsyncadd [#allocation8], 0
          %s209 = sshll.u32 %s4, 4
          %s210 = int_to_ptr.hbm [resolvable:$true] %s209
          %s211 = sshll.u32 [#allocation7], 4
          %s212 = int_to_ptr.vmem [resolvable:$true] %s211
          %217 = dma.hbm_to_vmem [thread:$0]  %s210, 2048, %s212, [#allocation8], 128, 128, 8
        $region24: #{tpu_custom_call.1} parent=11 // pred_fallthru
          _
        // Predicated region
        $region25: #{tpu_custom_call.1} parent=11 // pred_check
          %p218 = pneg %p151
        $region26: #{tpu_custom_call.1} parent=11 // pred_check_branch
          %220 = sbr.rel (%p218) target = $region28
        $region27: #{tpu_custom_call.1} parent=11 // pred_region
          _
        $region28: #{tpu_custom_call.1} parent=11 // pred_fallthru
          _
      $region12: #{tpu_custom_call.1} parent=5 // pred_fallthru
        _
      %p221 = scmp.lt.s32.totalorder %s15, 3
      // Predicated region
      $region29: #{tpu_custom_call.1} parent=5 // pred_check
        %p222 = pneg %p221
      $region30: #{tpu_custom_call.1} parent=5 // pred_check_branch
        %224 = sbr.rel (%p222) target = $region32
      $region31: #{tpu_custom_call.1} parent=5 // pred_region
        // Predicated region
        $region33: #{tpu_custom_call.1} parent=31 // pred_check
          %p225 = pneg %p35
        $region34: #{tpu_custom_call.1} parent=31 // pred_check_branch
          %227 = sbr.rel (%p225) target = $region36
        $region35: #{tpu_custom_call.1} parent=31 // pred_region
          %s228 = smul.u32 16, %s15
          %p229 = scmp.lt.s32.totalorder %s228, 47
          %s230 = scalar_select %p229, %s228, 47
          %s231 = smul.addr %s230, 8
          %s232 = scalar_lea.vmem %s0, %s231
          %s233 = smul.u32 16, %s15
        $region36: #{tpu_custom_call.1} parent=31 // pred_fallthru
          _
        // Predicated region
        $region37: #{tpu_custom_call.1} parent=31 // pred_check
          %p234 = pneg %p61
        $region38: #{tpu_custom_call.1} parent=31 // pred_check_branch
          %236 = sbr.rel (%p234) target = $region40
        $region39: #{tpu_custom_call.1} parent=31 // pred_region
          %s237 = smul.u32 16, %s15
          %p238 = scmp.lt.s32.totalorder %s237, 47
          %s239 = scalar_select %p238, %s237, 47
          %s240 = smul.addr %s239, 8
          %s241 = scalar_lea.vmem %s1, %s240
          %s242 = smul.u32 16, %s15
        $region40: #{tpu_custom_call.1} parent=31 // pred_fallthru
          _
      $region32: #{tpu_custom_call.1} parent=5 // pred_fallthru
        _
      %p243 = scmp.le.s32.totalorder 1, %s15
      %p244 = scmp.lt.s32.totalorder %s15, 4
      %p245 = pnand %p243, %p244
      %p246 = pneg %p245
      // Predicated region
      $region41: #{tpu_custom_call.1} parent=5 // pred_check
        _
      $region42: #{tpu_custom_call.1} parent=5 // pred_check_branch
        %248 = sbr.rel (%p245) target = $region44
      $region43: #{tpu_custom_call.1} parent=5 // pred_region
        %s249 = ssub.s32 %s15, 1
        // Predicated region
        $region45: #{tpu_custom_call.1} parent=43 // pred_check
          %p250 = pneg %p88
        $region46: #{tpu_custom_call.1} parent=43 // pred_check_branch
          %252 = sbr.rel (%p250) target = $region48
        $region47: #{tpu_custom_call.1} parent=43 // pred_region
          %254 = dma.done [#allocation5], 2048
        $region48: #{tpu_custom_call.1} parent=43 // pred_fallthru
          _
        // Predicated region
        $region49: #{tpu_custom_call.1} parent=43 // pred_check
          %p255 = pneg %p130
        $region50: #{tpu_custom_call.1} parent=43 // pred_check_branch
          %257 = sbr.rel (%p255) target = $region52
        $region51: #{tpu_custom_call.1} parent=43 // pred_region
          %259 = dma.done [#allocation8], 2048
        $region52: #{tpu_custom_call.1} parent=43 // pred_fallthru
          _
        %s260 = smul.u32 16, %s20
        %p261 = scmp.lt.s32.totalorder %s260, 47
        %s262 = scalar_select %p261, %s260, 47
        %s263 = smul.addr %s262, 8
        %s264 = scalar_lea.vmem %s0, %s263
        %p265 = pneg %p41
        %p266 = pneg %p38
        %s267 = smul.u32 16, %s20
        %p268 = scmp.lt.s32.totalorder %s267, 47
        %s269 = scalar_select %p268, %s267, 47
        %s270 = smul.addr %s269, 8
        %s271 = scalar_lea.vmem %s1, %s270
        %p272 = pneg %p67
        %p273 = pneg %p64
        %p274 = pneg %p88
        %p275 = pneg %p85
        %p276 = pneg %p109
        %p277 = pneg %p106
        %p278 = pneg %p130
        %p279 = pneg %p127
        %p280 = pneg %p151
        %p281 = pneg %p148
        %p282 = pneg %p172
        %p283 = pneg %p169
        %s284 = smul.u32 16, %s20
        %p285 = scmp.lt.s32.totalorder %s284, 47
        %s286 = scalar_select %p285, %s284, 47
        %s287 = smul.addr %s286, 8
        %s288 = scalar_lea.vmem %s0, %s287
        %s289 = smul.u32 16, %s20
        %s290 = smul.u32 16, %s20
        %p291 = scmp.lt.s32.totalorder %s290, 47
        %s292 = scalar_select %p291, %s290, 47
        %s293 = smul.addr %s292, 8
        %s294 = scalar_lea.vmem %s1, %s293
        %s295 = smul.u32 16, %s20
        %p297 = scmp.eq.s32.totalorder %s20, 0
        // Predicated region
        $region53: #{tpu_custom_call.1} parent=43 // pred_check
          %p298 = pneg %p297
        $region54: #{tpu_custom_call.1} parent=43 // pred_check_branch
          %300 = sbr.rel (%p298) target = $region56
        $region55: #{tpu_custom_call.1} parent=43 // pred_region
          %301 = vst [vmem:[#allocation2] sm:$0xff] 0.0
          %vm302 = vcmask 7168
          %303 = vst.msk [vmem:[#allocation3] sm:$0xff] %vm302, 0.0
        $region56: #{tpu_custom_call.1} parent=43 // pred_fallthru
          _
        %v304 = vld [vmem:[%s288] sm:$0xff]
        %v305 = vld [vmem:[%s288 + $0x8] sm:$0xff]
        %v306 = vld [vmem:[%s288 + $0x10] sm:$0xff]
        %v307 = vld [vmem:[%s288 + $0x18] sm:$0xff]
        %v308 = vld [vmem:[%s288 + $0x20] sm:$0xff]
        %v309 = vld [vmem:[%s288 + $0x28] sm:$0xff]
        %v310 = vld [vmem:[%s288 + $0x30] sm:$0xff]
        %v311 = vld [vmem:[%s288 + $0x38] sm:$0xff]
        %v312 = vld [vmem:[%s288 + $0x40] sm:$0xff]
        %v313 = vld [vmem:[%s288 + $0x48] sm:$0xff]
        %v314 = vld [vmem:[%s288 + $0x50] sm:$0xff]
        %v315 = vld [vmem:[%s288 + $0x58] sm:$0xff]
        %v316 = vld [vmem:[%s288 + $0x60] sm:$0xff]
        %v317 = vld [vmem:[%s288 + $0x68] sm:$0xff]
        %v318 = vld [vmem:[%s288 + $0x70] sm:$0xff]
        %v319 = vld [vmem:[%s288 + $0x78] sm:$0xff]
        %v320 = vld [vmem:[%s294] sm:$0xff]
        %v321 = vld [vmem:[%s294 + $0x8] sm:$0xff]
        %v322 = vld [vmem:[%s294 + $0x10] sm:$0xff]
        %v323 = vld [vmem:[%s294 + $0x18] sm:$0xff]
        %v324 = vld [vmem:[%s294 + $0x20] sm:$0xff]
        %v325 = vld [vmem:[%s294 + $0x28] sm:$0xff]
        %v326 = vld [vmem:[%s294 + $0x30] sm:$0xff]
        %v327 = vld [vmem:[%s294 + $0x38] sm:$0xff]
        %v328 = vld [vmem:[%s294 + $0x40] sm:$0xff]
        %v329 = vld [vmem:[%s294 + $0x48] sm:$0xff]
        %v330 = vld [vmem:[%s294 + $0x50] sm:$0xff]
        %v331 = vld [vmem:[%s294 + $0x58] sm:$0xff]
        %v332 = vld [vmem:[%s294 + $0x60] sm:$0xff]
        %v333 = vld [vmem:[%s294 + $0x68] sm:$0xff]
        %v334 = vld [vmem:[%s294 + $0x70] sm:$0xff]
        %v335 = vld [vmem:[%s294 + $0x78] sm:$0xff]
        %v336 = vlaneseq
        %v337 = vand.u32 %v336, 127
        %338 = vset.pattern.permute.xlu0 0
        %339 = vperm.xlu0 %338, %v304
        %v340 = vpop.permute.xlu0 %339
        %341 = vset.pattern.permute.xlu0 0
        %342 = vperm.xlu0 %341, %v305
        %v343 = vpop.permute.xlu0 %342
        %344 = vset.pattern.permute.xlu0 0
        %345 = vperm.xlu0 %344, %v306
        %v346 = vpop.permute.xlu0 %345
        %347 = vset.pattern.permute.xlu0 0
        %348 = vperm.xlu0 %347, %v307
        %v349 = vpop.permute.xlu0 %348
        %350 = vset.pattern.permute.xlu0 0
        %351 = vperm.xlu0 %350, %v308
        %v352 = vpop.permute.xlu0 %351
        %353 = vset.pattern.permute.xlu0 0
        %354 = vperm.xlu0 %353, %v309
        %v355 = vpop.permute.xlu0 %354
        %356 = vset.pattern.permute.xlu0 0
        %357 = vperm.xlu0 %356, %v310
        %v358 = vpop.permute.xlu0 %357
        %359 = vset.pattern.permute.xlu0 0
        %360 = vperm.xlu0 %359, %v311
        %v361 = vpop.permute.xlu0 %360
        %362 = vset.pattern.permute.xlu0 0
        %363 = vperm.xlu0 %362, %v312
        %v364 = vpop.permute.xlu0 %363
        %365 = vset.pattern.permute.xlu0 0
        %366 = vperm.xlu0 %365, %v313
        %v367 = vpop.permute.xlu0 %366
        %368 = vset.pattern.permute.xlu0 0
        %369 = vperm.xlu0 %368, %v314
        %v370 = vpop.permute.xlu0 %369
        %371 = vset.pattern.permute.xlu0 0
        %372 = vperm.xlu0 %371, %v315
        %v373 = vpop.permute.xlu0 %372
        %374 = vset.pattern.permute.xlu0 0
        %375 = vperm.xlu0 %374, %v316
        %v376 = vpop.permute.xlu0 %375
        %377 = vset.pattern.permute.xlu0 0
        %378 = vperm.xlu0 %377, %v317
        %v379 = vpop.permute.xlu0 %378
        %380 = vset.pattern.permute.xlu0 0
        %381 = vperm.xlu0 %380, %v318
        %v382 = vpop.permute.xlu0 %381
        %383 = vset.pattern.permute.xlu0 0
        %384 = vperm.xlu0 %383, %v319
        %v385 = vpop.permute.xlu0 %384
        %vm386 = vcmp.eq.s32.totalorder %v337, %v340
        %vm387 = vcmp.eq.s32.totalorder %v337, %v343
        %vm388 = vcmp.eq.s32.totalorder %v337, %v346
        %vm389 = vcmp.eq.s32.totalorder %v337, %v349
        %vm390 = vcmp.eq.s32.totalorder %v337, %v352
        %vm391 = vcmp.eq.s32.totalorder %v337, %v355
        %vm392 = vcmp.eq.s32.totalorder %v337, %v358
        %vm393 = vcmp.eq.s32.totalorder %v337, %v361
        %vm394 = vcmp.eq.s32.totalorder %v337, %v364
        %vm395 = vcmp.eq.s32.totalorder %v337, %v367
        %vm396 = vcmp.eq.s32.totalorder %v337, %v370
        %vm397 = vcmp.eq.s32.totalorder %v337, %v373
        %vm398 = vcmp.eq.s32.totalorder %v337, %v376
        %vm399 = vcmp.eq.s32.totalorder %v337, %v379
        %vm400 = vcmp.eq.s32.totalorder %v337, %v382
        %vm401 = vcmp.eq.s32.totalorder %v337, %v385
        %v402 = vsel %vm386, 1, 0
        %v403 = vsel %vm387, 1, 0
        %v404 = vsel %vm388, 1, 0
        %v405 = vsel %vm389, 1, 0
        %v406 = vsel %vm390, 1, 0
        %v407 = vsel %vm391, 1, 0
        %v408 = vsel %vm392, 1, 0
        %v409 = vsel %vm393, 1, 0
        %v410 = vsel %vm394, 1, 0
        %v411 = vsel %vm395, 1, 0
        %v412 = vsel %vm396, 1, 0
        %v413 = vsel %vm397, 1, 0
        %v414 = vsel %vm398, 1, 0
        %v415 = vsel %vm399, 1, 0
        %v416 = vsel %vm400, 1, 0
        %v417 = vsel %vm401, 1, 0
        %v418 = vcvt.s32.f32 %v402
        %v419 = vcvt.s32.f32 %v403
        %v420 = vcvt.s32.f32 %v404
        %v421 = vcvt.s32.f32 %v405
        %v422 = vcvt.s32.f32 %v406
        %v423 = vcvt.s32.f32 %v407
        %v424 = vcvt.s32.f32 %v408
        %v425 = vcvt.s32.f32 %v409
        %v426 = vcvt.s32.f32 %v410
        %v427 = vcvt.s32.f32 %v411
        %v428 = vcvt.s32.f32 %v412
        %v429 = vcvt.s32.f32 %v413
        %v430 = vcvt.s32.f32 %v414
        %v431 = vcvt.s32.f32 %v415
        %v432 = vcvt.s32.f32 %v416
        %v433 = vcvt.s32.f32 %v417
        %v434 = vpack.c.bf16 %v419, %v418
        %v435 = vpack.c.bf16 %v421, %v420
        %v436 = vpack.c.bf16 %v423, %v422
        %v437 = vpack.c.bf16 %v425, %v424
        %v438 = vpack.c.bf16 %v427, %v426
        %v439 = vpack.c.bf16 %v429, %v428
        %v440 = vpack.c.bf16 %v431, %v430
        %v441 = vpack.c.bf16 %v433, %v432
        %v442 = vld [vmem:[#allocation2] sm:$0xff]
        %v443 = vpack.c.bf16 %v321, %v320
        %v444 = vpack.c.bf16 %v323, %v322
        %v445 = vpack.c.bf16 %v325, %v324
        %v446 = vpack.c.bf16 %v327, %v326
        %v447 = vpack.c.bf16 %v329, %v328
        %v448 = vpack.c.bf16 %v331, %v330
        %v449 = vpack.c.bf16 %v333, %v332
        %v450 = vpack.c.bf16 %v335, %v334
        %451 = vxpose.xlu0.c.b16.start [1/8] %v434, 128
        %452 = vxpose.xlu0.c.b16.cont [2/8] %v435, 128
        %453 = vxpose.xlu0.c.b16.cont [3/8] %v436, 128
        %454 = vxpose.xlu0.c.b16.cont [4/8] %v437, 128
        %455 = vxpose.xlu0.c.b16.cont [5/8] %v438, 128
        %456 = vxpose.xlu0.c.b16.cont [6/8] %v439, 128
        %457 = vxpose.xlu0.c.b16.cont [7/8] %v440, 128
        %458 = vxpose.xlu0.c.b16.end [8/8] %v441, 128
        %v459 = vpop.trf.xlu0
        %v460 = vpop.trf.xlu0
        %v461 = vpop.trf.xlu0
        %v462 = vpop.trf.xlu0
        %v463 = vpop.trf.xlu0
        %v464 = vpop.trf.xlu0
        %v465 = vpop.trf.xlu0
        %v466 = vpop.trf.xlu0
        %467 = vmatpush.bf16.msra.mxu0 %v450
        %468 = vmatpush.bf16.msra.mxu0 %v449
        %469 = vmatpush.bf16.msra.mxu0 %v448
        %470 = vmatpush.bf16.msra.mxu0 %v447
        %471 = vmatpush.bf16.msra.mxu0 %v446
        %472 = vmatpush.bf16.msra.mxu0 %v445
        %473 = vmatpush.bf16.msra.mxu0 %v444
        %474 = vmatpush.bf16.msra.mxu0 %v443
        %475 = vmatmul.bf16.gmra.mxu0 %v459
        %v476 = vpop.f32.mrf.mxu0
        %v477 = vadd.f32 0.0, %v476
        %v478 = vpop.f32.mrf.mxu0
        %479 = vdwg.mxu0
        %v480 = vadd.f32 %v442, %v477
        %481 = vst [vmem:[#allocation2] sm:$0xff] %v480
        %v482 = vld [vmem:[#allocation3] sm:$0xff]
        %483 = vmatpush.bf16.msra.mxu0 1065369472
        %484 = vmatpush.bf16.msra.mxu0 1065369472
        %485 = vmatpush.bf16.msra.mxu0 1065369472
        %486 = vmatpush.bf16.msra.mxu0 1065369472
        %487 = vmatpush.bf16.msra.mxu0 1065369472
        %488 = vmatpush.bf16.msra.mxu0 1065369472
        %489 = vmatpush.bf16.msra.mxu0 1065369472
        %490 = vmatpush.bf16.msra.mxu0 1065369472
        %491 = vmatmul.bf16.gmra.mxu0 %v459
        %v492 = vpop.f32.mrf.mxu0
        %v493 = vadd.f32 0.0, %v492
        %v494 = vpop.f32.mrf.mxu0
        %495 = vdwg.mxu0
        %v496 = vadd.f32 %v482, %v493
        %vm497 = vcmask 7168
        %498 = vst.msk [vmem:[#allocation3] sm:$0xff] %vm497, %v496
        %p499 = scmp.eq.s32.totalorder %s20, 2
        // Predicated region
        $region57: #{tpu_custom_call.1} parent=43 // pred_check
          %p500 = pneg %p499
        $region58: #{tpu_custom_call.1} parent=43 // pred_check_branch
          %502 = sbr.rel (%p500) target = $region60
        $region59: #{tpu_custom_call.1} parent=43 // pred_region
          %v503 = vld [vmem:[#allocation2] sm:$0xff]
          %v504 = vld [vmem:[#allocation3] sm:$0xff]
          %v505 = vmax.f32 %v504, 1.0
          %507 = vset.pattern.permute.xlu0 0
          %508 = vperm.xlu0 %507, %v505
          %v509 = vpop.permute.xlu0 %508
          %v511 = vrcp.pop %v509
          %v512 = vmul.f32 %v509, %v511
          %v513 = vsub.f32 1.0, %v512
          %v514 = vmul.f32 %v511, %v513
          %v515 = vadd.f32 %v511, %v514
          %vm516 = vweird.f32 %v509
          %vm517 = vweird.f32 %v511
          %vm518 = vmor %vm516, %vm517
          %v519 = vsel %vm518, %v511, %v515
          %v520 = vand.u32 2147483647, %v509
          %vm521 = vcmp.eq.f32.partialorder %v520, 8.507059e+37
          %v522 = vand.u32 %v509, 2147483648
          %v523 = vor.u32 1.1754944e-38, %v522
          %v524 = vsel %vm521, %v523, %v519
          %v525 = vmul.f32 %v503, %v524
          %v526 = vld [vmem:[#allocation4] sm:$0xff]
          %v527 = vld [vmem:[#allocation4 + $0x8] sm:$0xff]
          %v528 = vld [vmem:[#allocation4 + $0x10] sm:$0xff]
          %v529 = vld [vmem:[#allocation4 + $0x18] sm:$0xff]
          %v530 = vld [vmem:[#allocation4 + $0x20] sm:$0xff]
          %v531 = vld [vmem:[#allocation4 + $0x28] sm:$0xff]
          %v532 = vld [vmem:[#allocation4 + $0x30] sm:$0xff]
          %v533 = vld [vmem:[#allocation4 + $0x38] sm:$0xff]
          %v534 = vld [vmem:[#allocation4 + $0x40] sm:$0xff]
          %v535 = vld [vmem:[#allocation4 + $0x48] sm:$0xff]
          %v536 = vld [vmem:[#allocation4 + $0x50] sm:$0xff]
          %v537 = vld [vmem:[#allocation4 + $0x58] sm:$0xff]
          %v538 = vld [vmem:[#allocation4 + $0x60] sm:$0xff]
          %v539 = vld [vmem:[#allocation4 + $0x68] sm:$0xff]
          %v540 = vld [vmem:[#allocation4 + $0x70] sm:$0xff]
          %v541 = vld [vmem:[#allocation4 + $0x78] sm:$0xff]
          %v542 = vld [vmem:[%s3] sm:$0x1]
          %v544 = vperm.slane %v542, 0
          %546 = vmatpush.msra.mxu0 %v541
          %547 = vmatpush.msra.mxu0 %v540
          %548 = vmatpush.msra.mxu0 %v539
          %549 = vmatpush.msra.mxu0 %v538
          %550 = vmatpush.msra.mxu0 %v537
          %551 = vmatpush.msra.mxu0 %v536
          %552 = vmatpush.msra.mxu0 %v535
          %553 = vmatpush.msra.mxu0 %v534
          %554 = vmatpush.msra.mxu0 %v533
          %555 = vmatpush.msra.mxu0 %v532
          %556 = vmatpush.msra.mxu0 %v531
          %557 = vmatpush.msra.mxu0 %v530
          %558 = vmatpush.msra.mxu0 %v529
          %559 = vmatpush.msra.mxu0 %v528
          %560 = vmatpush.msra.mxu0 %v527
          %561 = vmatpush.msra.mxu0 %v526
          %562 = vmatmul.f32.gmra.mxu0 %v525
          %v563 = vpop.f32.mrf.mxu0
          %v564 = vadd.f32 %v544, %v563
          %565 = vdwg.mxu0
          %v566 = vmax.f32 %v564, 0.0
          %v567 = vld [vmem:[#allocation7] sm:$0xff]
          %v568 = vld [vmem:[#allocation7 + $0x8] sm:$0xff]
          %v569 = vld [vmem:[#allocation7 + $0x10] sm:$0xff]
          %v570 = vld [vmem:[#allocation7 + $0x18] sm:$0xff]
          %v571 = vld [vmem:[#allocation7 + $0x20] sm:$0xff]
          %v572 = vld [vmem:[#allocation7 + $0x28] sm:$0xff]
          %v573 = vld [vmem:[#allocation7 + $0x30] sm:$0xff]
          %v574 = vld [vmem:[#allocation7 + $0x38] sm:$0xff]
          %v575 = vld [vmem:[#allocation7 + $0x40] sm:$0xff]
          %v576 = vld [vmem:[#allocation7 + $0x48] sm:$0xff]
          %v577 = vld [vmem:[#allocation7 + $0x50] sm:$0xff]
          %v578 = vld [vmem:[#allocation7 + $0x58] sm:$0xff]
          %v579 = vld [vmem:[#allocation7 + $0x60] sm:$0xff]
          %v580 = vld [vmem:[#allocation7 + $0x68] sm:$0xff]
          %v581 = vld [vmem:[#allocation7 + $0x70] sm:$0xff]
          %v582 = vld [vmem:[#allocation7 + $0x78] sm:$0xff]
          %v583 = vld [vmem:[%s5] sm:$0x1]
          %v585 = vperm.slane %v583, 0
          %587 = vmatpush.msra.mxu0 %v582
          %588 = vmatpush.msra.mxu0 %v581
          %589 = vmatpush.msra.mxu0 %v580
          %590 = vmatpush.msra.mxu0 %v579
          %591 = vmatpush.msra.mxu0 %v578
          %592 = vmatpush.msra.mxu0 %v577
          %593 = vmatpush.msra.mxu0 %v576
          %594 = vmatpush.msra.mxu0 %v575
          %595 = vmatpush.msra.mxu0 %v574
          %596 = vmatpush.msra.mxu0 %v573
          %597 = vmatpush.msra.mxu0 %v572
          %598 = vmatpush.msra.mxu0 %v571
          %599 = vmatpush.msra.mxu0 %v570
          %600 = vmatpush.msra.mxu0 %v569
          %601 = vmatpush.msra.mxu0 %v568
          %602 = vmatpush.msra.mxu0 %v567
          %603 = vmatmul.f32.gmra.mxu0 %v566
          %v604 = vpop.f32.mrf.mxu0
          %v605 = vadd.f32 %v585, %v604
          %606 = vdwg.mxu0
          %v607 = vxor.u32 %v605, 2147483648
          %v608 = vmul.f32 %v607, 1.442695
          %v609 = vpow.pop %v608
          %v610 = vadd.f32 %v609, 1.0
          %v611 = vrcp.pop %v610
          %v612 = vmul.f32 %v610, %v611
          %v613 = vsub.f32 1.0, %v612
          %v614 = vmul.f32 %v611, %v613
          %v615 = vadd.f32 %v611, %v614
          %vm616 = vweird.f32 %v610
          %vm617 = vweird.f32 %v611
          %vm618 = vmor %vm616, %vm617
          %v619 = vsel %vm618, %v611, %v615
          %v620 = vand.u32 2147483647, %v610
          %vm621 = vcmp.eq.f32.partialorder %v620, 8.507059e+37
          %v622 = vand.u32 %v610, 2147483648
          %v623 = vor.u32 1.1754944e-38, %v622
          %v624 = vsel %vm621, %v623, %v619
          %v625 = vmul.f32 1.0, %v624
          %626 = vst [vmem:[#allocation9] sm:$0xff] %v625
        $region60: #{tpu_custom_call.1} parent=43 // pred_fallthru
          _
        // Predicated region
        $region61: #{tpu_custom_call.1} parent=43 // pred_check
          %p627 = pneg %p169
        $region62: #{tpu_custom_call.1} parent=43 // pred_check_branch
          %629 = sbr.rel (%p627) target = $region64
        $region63: #{tpu_custom_call.1} parent=43 // pred_region
          %631 = vsyncadd [#allocation6], 0
          %s633 = sshll.u32 [#allocation9], 4
          %s634 = int_to_ptr.vmem [resolvable:$true] %s633
          %s635 = sshll.u32 %s6, 4
          %s636 = int_to_ptr.hbm [resolvable:$true] %s635
          %638 = dma.vmem_to_hbm [thread:$0]  %s634, 128, %s636, [#allocation6]
        $region64: #{tpu_custom_call.1} parent=43 // pred_fallthru
          _
        // Predicated region
        $region65: #{tpu_custom_call.1} parent=43 // pred_check
          %p639 = pneg %p169
        $region66: #{tpu_custom_call.1} parent=43 // pred_check_branch
          %641 = sbr.rel (%p639) target = $region68
        $region67: #{tpu_custom_call.1} parent=43 // pred_region
          %643 = dma.done [#allocation6], 128
        $region68: #{tpu_custom_call.1} parent=43 // pred_fallthru
          _
      $region44: #{tpu_custom_call.1} parent=5 // pred_fallthru
        _
      %p644 = scmp.le.s32.totalorder 2, %s15
      // Predicated region
      $region69: #{tpu_custom_call.1} parent=5 // pred_check
        %p645 = pneg %p644
      $region70: #{tpu_custom_call.1} parent=5 // pred_check_branch
        %647 = sbr.rel (%p645) target = $region72
      $region71: #{tpu_custom_call.1} parent=5 // pred_region
        %s648 = ssub.s32 %s15, 2
      $region72: #{tpu_custom_call.1} parent=5 // pred_fallthru
        _
    $region6: #{tpu_custom_call.1} parent=1 // loop_footer
      %s19 = sadd.s32 1, %s15
    $region7: #{tpu_custom_call.1} parent=1 // loop_footer_branch
      %14 = sbr.rel target = $region3
    $region8: #{tpu_custom_call.1} parent=1 // loop_exit
      _
    %649 = vsyncpa [#allocation5], 1
    %s650 = scalar_lea.sflag [#allocation5], 1
    %651 = vsyncpa %s650, 1
    %652 = vsyncpa [#allocation8], 1
    %653 = vsyncpa [#allocation6], 1
    %s654 = scalar_lea.sflag [#allocation6], 1
    %655 = vsyncpa %s654, 1

</llo_original>
